<compile_context>
chip_gen: v5e
topology: v5e:2x2
jax: 0.10.0
libtpu: 0.0.40
codegen_flags: <defaults>
</compile_context>

<pallas_src>
import functools
import re
from typing import Iterable, Union

import jax
import jax.numpy as jnp
from jax.experimental import pallas as pl
from jax.experimental.pallas import tpu as pltpu


# ----------------------------------------------------------------------------
# Tiling helpers
# ----------------------------------------------------------------------------
_TARGET_TILE_ELEMS = 512 * 1024          # ~2 MiB of f32 per input tile
_VMEM_LIMIT_BYTES = 32 * 1024 * 1024     # explicit scoped-VMEM budget


def _sublane_multiple(*dtypes) -> int:
    """Sublane packing multiple for the widest packing among the inputs."""
    m = 8
    for dt in dtypes:
        itemsize = jnp.dtype(dt).itemsize
        m = max(m, 8 * max(1, 4 // itemsize))   # f32:8, bf16:16, int8/fp8:32
    return m


def _choose_block_rows(n_rows: int, n_cols: int, sub_mult: int) -> int:
    """Largest row-tile near the target tile size, (8,128)-legal."""
    rows = max(1, _TARGET_TILE_ELEMS // max(n_cols, 1))
    if rows >= n_rows:
        return n_rows                      # single full-extent block (always legal)
    rows = max(sub_mult, (rows // sub_mult) * sub_mult)
    if rows >= n_rows:
        return n_rows
    return rows


def _flatten_to_2d(a: jax.Array):
    """Collapse leading dims (layout-preserving); keep the last dim on lanes."""
    if a.ndim == 0:
        return a.reshape(1, 1), 1, 1
    n_cols = int(a.shape[-1])
    n_rows = int(a.size // max(n_cols, 1))
    return a.reshape(n_rows, n_cols), n_rows, n_cols


# ----------------------------------------------------------------------------
# Pallas kernels
# ----------------------------------------------------------------------------
def _accumulate_and_finalize(vals, out_ref, acc_ref, *, block_rows, total_rows,
                             needs_mask):
    """Shared reduction body: elementwise-accumulate a tile, reduce once at end.

    Grid is (num_shards [parallel], steps_per_shard [arbitrary]).
    `acc_ref` is a full-tile f32 VMEM scratch; per-step work is pure VPU adds.
    The single XLU reduce + scalar store happens only at the last step.
    """
    step = pl.program_id(1)
    n_steps = pl.num_programs(1)

    @pl.when(step == 0)
    def _init():
        acc_ref[...] = jnp.zeros_like(acc_ref)

    if needs_mask:
        # Logical row range of this (shard, step); masks both the ragged last
        # tile and any duplicated (index-clamped) tile of an uneven shard.
        shard = pl.program_id(0)
        row0 = (shard * n_steps + step) * block_rows
        rows = row0 + jax.lax.broadcasted_iota(jnp.int32, vals.shape, 0)
        vals = jnp.where(rows < total_rows, vals, 0.0)

    acc_ref[...] += vals

    @pl.when(step == n_steps - 1)
    def _finalize():
        total = jnp.sum(acc_ref[...])
        out_ref[...] = jnp.zeros(out_ref.shape, jnp.float32) + total


def _sqerr_sum_kernel(x_ref, t_ref, out_ref, acc_ref, *, block_rows,
                      total_rows, needs_mask):
    """Fused criterion + reduction: accumulate (x - t)^2, never hitting HBM."""
    d = x_ref[...].astype(jnp.float32) - t_ref[...].astype(jnp.float32)
    _accumulate_and_finalize(d * d, out_ref, acc_ref, block_rows=block_rows,
                             total_rows=total_rows, needs_mask=needs_mask)


def _sum_kernel(l_ref, out_ref, acc_ref, *, block_rows, total_rows, needs_mask):
    """Global sum of an arbitrary precomputed loss tensor (base Loss.reduce)."""
    _accumulate_and_finalize(l_ref[...].astype(jnp.float32), out_ref, acc_ref,
                             block_rows=block_rows, total_rows=total_rows,
                             needs_mask=needs_mask)


def _launch_partial_sums(kernel, arrays_2d, n_rows, n_cols, block_rows=None):
    """Build grid/specs and launch a 2-axis (shard, step) streaming reduction."""
    sub_mult = _sublane_multiple(*[a.dtype for a in arrays_2d])
    if block_rows is None:
        block_rows = _choose_block_rows(n_rows, n_cols, sub_mult)

    n_tiles = -(-n_rows // block_rows)
    num_shards = 2 if n_tiles >= 2 else 1      # v7x: one shard per TensorCore
    steps_per_shard = -(-n_tiles // num_shards)
    needs_mask = (n_rows % block_rows != 0) or (num_shards * steps_per_shard != n_tiles)
    last_tile = n_tiles - 1

    def in_map(s, k):
        # Clamp the tile index so duplicated tiles of an uneven shard stay
        # in-bounds; their contribution is zeroed by the in-kernel row mask.
        t = s * steps_per_shard + k
        return (jnp.minimum(t, last_tile), 0)

    body = functools.partial(kernel, block_rows=block_rows,
                             total_rows=n_rows, needs_mask=needs_mask)
    out = pl.pallas_call(
        body,
        out_shape=jax.ShapeDtypeStruct((num_shards, 8, 128), jnp.float32),
        grid_spec=pltpu.PrefetchScalarGridSpec(
            num_scalar_prefetch=0,
            grid=(num_shards, steps_per_shard),
            in_specs=[pl.BlockSpec((block_rows, n_cols), in_map)
                      for _ in arrays_2d],
            out_specs=pl.BlockSpec((1, 8, 128), lambda s, k: (s, 0, 0)),
            scratch_shapes=[pltpu.VMEM((block_rows, n_cols), jnp.float32)],
        ),
        compiler_params=pltpu.CompilerParams(
            dimension_semantics=("parallel", "arbitrary"),
            vmem_limit_bytes=_VMEM_LIMIT_BYTES),
    )(*arrays_2d)
    # Each shard writes its partial sum splatted over its (8,128) block.
    return jnp.sum(out[:, 0, 0])


# ----------------------------------------------------------------------------
# Public wrappers
# ----------------------------------------------------------------------------
def pallas_sq_err_sum(x: jax.Array, target: jax.Array, block_rows=None) -> jax.Array:
    """sum((x - target)^2) computed in one fused streaming kernel."""
    assert x.shape == target.shape, (x.shape, target.shape)
    x2, n_rows, n_cols = _flatten_to_2d(x)
    t2, _, _ = _flatten_to_2d(target)
    return _launch_partial_sums(_sqerr_sum_kernel, [x2, t2], n_rows, n_cols,
                                block_rows)


def pallas_global_sum(loss: jax.Array, block_rows=None) -> jax.Array:
    """Global sum of an arbitrary loss tensor (used by generic Loss.reduce)."""
    l2, n_rows, n_cols = _flatten_to_2d(loss)
    return _launch_partial_sums(_sum_kernel, [l2], n_rows, n_cols, block_rows)


def _reduction_denominator(shape, reduction) -> float:
    if reduction is None:
        return float(shape[0])                       # loss.mean(0).sum()
    if reduction == "mean":
        n = 1
        for d in shape:
            n *= int(d)
        return float(n)                              # loss.mean()
    if reduction == "seq":
        assert len(shape) == 3, "reduction='seq' expects a (B, S, D) loss"
        return float(shape[0] * shape[2])            # loss.mean(0).mean(1).sum()
    raise ValueError(f"unknown reduction: {reduction!r}")


def pallas_reduce(loss: jax.Array, reduction=None) -> jax.Array:
    """Exact semantics of vschaos Loss.reduce for a (B, S, D) loss tensor."""
    assert loss.ndim == 3, "expected (B, S, D) loss tensor"
    total = pallas_global_sum(loss)
    return total / _reduction_denominator(loss.shape, reduction)


# ----------------------------------------------------------------------------
# Python-side module structure (mirrors the PyTorch classes)
# ----------------------------------------------------------------------------
def checklist(item, n=1):
    if not isinstance(item, (list, tuple)):
        return [item] * n
    return list(item)


class Loss:
    def __init__(self, reduction=None):
        self.reduction = reduction

    def reduce(self, loss, **kwargs):
        reduction = kwargs["reduction"] if "reduction" in kwargs else self.reduction
        return pallas_reduce(loss, reduction)

    def forward(self, *args, drop_detail: bool = False, **kwargs):
        raise NotImplementedError

    def __call__(self, *args, **kwargs):
        return self.forward(*args, **kwargs)

    def __add__(self, other):
        if type(other) == LossContainer:
            return other.__radd__(self)
        elif isinstance(other, Loss):
            return LossContainer(criterions=[self, other], weight=[1.0, 1.0])
        else:
            raise TypeError

    def __mul__(self, other):
        if isinstance(other, (int, float)):
            return LossContainer(criterions=[self], weight=[other])
        else:
            raise TypeError

    def __rmul__(self, other):
        return self.__mul__(other)

    def __truediv__(self, other):
        if isinstance(other, (int, float)):
            return self.__mul__(1 / other)
        else:
            raise TypeError


class LossContainer(Loss):
    def __init__(self, criterions: Iterable[Loss] = None,
                 weight: Union[float, Iterable[float]] = 1.0, **kwargs):
        super().__init__(**kwargs)
        assert criterions is not None, '"criterions" keyword is required for LossContainer'
        self._criterions = list(criterions)
        self._weight = checklist(weight, n=len(self._criterions))

    def _append_losses(self, full_dict: dict, new_dict: dict) -> dict:
        full_dict = dict(full_dict)
        for k, v in new_dict.items():
            matches = list(filter(
                lambda x: x is not None,
                [re.match('%s#(\\d*)' % k, k_tmp) for k_tmp in full_dict.keys()]))
            if len(matches) != 0:
                # note: original code indexes groups()[1]; the pattern has one
                # group, so the intended index is groups()[0].
                last_v = max([int(x.groups()[0]) for x in matches])
                full_dict[f'{k}#{last_v + 1}'] = v
            elif k in full_dict:
                full_dict[f'{k}#1'] = v
            else:
                full_dict[k] = v
        return full_dict

    def forward(self, *args, drop_detail: bool = False, **kwargs):
        losses = []
        loss = 0
        for i, criterion in enumerate(self._criterions):
            loss_tmp = criterion(*args, drop_detail=drop_detail, **kwargs)
            if drop_detail:
                loss_tmp, losses_tmp = loss_tmp
                losses.append(losses_tmp)
            loss = loss + self._weight[i] * loss_tmp
        if drop_detail:
            loss_dict = {}
            for lt in losses:
                loss_dict = self._append_losses(loss_dict, lt)
            return (loss, loss_dict)
        else:
            return loss

    def __radd__(self, other):
        if isinstance(other, Loss):
            return LossContainer(criterions=self._criterions + [other],
                                 weight=self._weight + [1.0])
        elif isinstance(other, LossContainer):
            return LossContainer(criterions=self._criterions + other._criterions,
                                 weight=self._weight + other._weight)
        else:
            raise TypeError


class SquaredErrorLoss(Loss):
    """Concrete criterion: per-element (x - target)^2 followed by Loss.reduce.

    The criterion and the reduction are fused into a single Pallas kernel so
    the per-element loss tensor never round-trips through HBM; only the scalar
    is produced (the detail dict only needs the scalar as well).
    """

    def forward(self, x, target, drop_detail: bool = False, **kwargs):
        reduction = kwargs["reduction"] if "reduction" in kwargs else self.reduction
        total = pallas_sq_err_sum(x, target)          # fused Pallas kernel
        loss = total / _reduction_denominator(x.shape, reduction)
        if drop_detail:
            return loss, {"sq_err": loss}
        return loss


# ----------------------------------------------------------------------------
# Demo / self-test
# ----------------------------------------------------------------------------
if __name__ == "__main__":
    key = jax.random.PRNGKey(0)
    k1, k2 = jax.random.split(key)
    B, S, D = 2, 8, 32
    x = jax.random.normal(k1, (B, S, D), dtype=jnp.float32)
    t = jax.random.normal(k2, (B, S, D), dtype=jnp.float32)

    crit_mean = SquaredErrorLoss(reduction="mean")
    crit_seq = SquaredErrorLoss(reduction="seq")
    container = crit_mean + crit_seq              # LossContainer, weights [1, 1]

    total, detail = container(x, t, drop_detail=True)
    total = jax.block_until_ready(total)

    # pure-JAX reference
    ref_elem = (x - t) ** 2
    ref = ref_elem.mean() + ref_elem.sum() / (B * D)
    assert abs(float(total) - float(ref)) < 1e-4, (float(total), float(ref))
    assert set(detail.keys()) == {"sq_err", "sq_err#1"}

    # each base-class reduction mode against torch semantics (standalone sum kernel)
    for mode, ref_val in [
        (None, ref_elem.mean(0).sum()),
        ("mean", ref_elem.mean()),
        ("seq", ref_elem.mean(0).mean(1).sum()),
    ]:
        got = jax.block_until_ready(pallas_reduce(ref_elem, mode))
        assert abs(float(got) - float(ref_val)) < 1e-4, (mode, float(got), float(ref_val))

    # multi-tile / ragged / 2-shard path (forced small block_rows for coverage)
    B2, S2, D2 = 4, 5, 32                          # 20 rows, block 8 -> 3 tiles
    k3, k4 = jax.random.split(k2)
    x2 = jax.random.normal(k3, (B2, S2, D2), dtype=jnp.float32)
    t2 = jax.random.normal(k4, (B2, S2, D2), dtype=jnp.float32)
    got2 = jax.block_until_ready(pallas_sq_err_sum(x2, t2, block_rows=8))
    ref2 = float(jnp.sum((x2 - t2) ** 2))
    assert abs(float(got2) - ref2) < 1e-3 * max(1.0, abs(ref2)), (float(got2), ref2)

    # native bf16 inputs: cast happens inside the kernel, not in the wrapper
    xb, tb = x.astype(jnp.bfloat16), t.astype(jnp.bfloat16)
    got3 = jax.block_until_ready(pallas_sq_err_sum(xb, tb))
    ref3 = float(jnp.sum((xb.astype(jnp.float32) - tb.astype(jnp.float32)) ** 2))
    assert abs(float(got3) - ref3) < 1e-2 * max(1.0, abs(ref3)), (float(got3), ref3)

    print("KERNEL_OK")
</pallas_src>

<mosaic_0001>
module attributes {stable_mosaic.version = 11 : i64} {
  func.func @_sqerr_sum_kernel(%arg0: i32, %arg1: i32, %arg2: memref<16x32xf32, #tpu.memory_space<vmem>>, %arg3: memref<16x32xf32, #tpu.memory_space<vmem>>, %arg4: memref<1x8x128xf32, #tpu.memory_space<vmem>>, %arg5: memref<16x32xf32, #tpu.memory_space<vmem>>) attributes {dimension_semantics = [#tpu.dimension_semantics<parallel>, #tpu.dimension_semantics<arbitrary>], iteration_bounds = array<i64: 1, 1>, scalar_prefetch = 0 : i64, scratch_operands = 1 : i64, tpu.core_type = #tpu.core_type<tc>, window_params = [{transform_indices = @transform_0, window_bounds = array<i64: 16, 32>}, {transform_indices = @transform_1, window_bounds = array<i64: 16, 32>}, {transform_indices = @transform_2, window_bounds = array<i64: 1, 8, 128>}]} {
    %c0 = arith.constant 0 : index
    %c0_0 = arith.constant 0 : index
    %0 = vector.load %arg2[%c0, %c0_0] : memref<16x32xf32, #tpu.memory_space<vmem>>, vector<16x32xf32>
    %c0_1 = arith.constant 0 : index
    %c0_2 = arith.constant 0 : index
    %1 = vector.load %arg3[%c0_1, %c0_2] : memref<16x32xf32, #tpu.memory_space<vmem>>, vector<16x32xf32>
    %2 = arith.subf %0, %1 : vector<16x32xf32>
    %3 = arith.mulf %2, %2 : vector<16x32xf32>
    %c0_i32 = arith.constant 0 : i32
    %4 = arith.cmpi eq, %arg1, %c0_i32 : i32
    %5 = arith.extui %4 : i1 to i32
    %c0_i32_3 = arith.constant 0 : i32
    %6 = arith.cmpi ne, %5, %c0_i32_3 : i32
    scf.if %6 {
      %cst = arith.constant 0.000000e+00 : f32
      %13 = vector.broadcast %cst : f32 to vector<16x32xf32>
      %c0_10 = arith.constant 0 : index
      %c0_11 = arith.constant 0 : index
      %14 = vector.load %arg5[%c0_10, %c0_11] : memref<16x32xf32, #tpu.memory_space<vmem>>, vector<16x32xf32>
      tpu.vector_store %arg5[%c0_10, %c0_11], %13 {strides = array<i32>} : memref<16x32xf32, #tpu.memory_space<vmem>>, vector<16x32xf32>,
    } else {
    }
    %c0_4 = arith.constant 0 : index
    %c0_5 = arith.constant 0 : index
    %7 = vector.load %arg5[%c0_4, %c0_5] : memref<16x32xf32, #tpu.memory_space<vmem>>, vector<16x32xf32>
    %8 = arith.addf %7, %3 : vector<16x32xf32>
    %c0_6 = arith.constant 0 : index
    %c0_7 = arith.constant 0 : index
    %9 = vector.load %arg5[%c0_6, %c0_7] : memref<16x32xf32, #tpu.memory_space<vmem>>, vector<16x32xf32>
    tpu.vector_store %arg5[%c0_6, %c0_7], %8 {strides = array<i32>} : memref<16x32xf32, #tpu.memory_space<vmem>>, vector<16x32xf32>,
    %c0_i32_8 = arith.constant 0 : i32
    %10 = arith.cmpi eq, %arg1, %c0_i32_8 : i32
    %11 = arith.extui %10 : i1 to i32
    %c0_i32_9 = arith.constant 0 : i32
    %12 = arith.cmpi ne, %11, %c0_i32_9 : i32
    scf.if %12 {
      %c0_10 = arith.constant 0 : index
      %c0_11 = arith.constant 0 : index
      %13 = vector.load %arg5[%c0_10, %c0_11] : memref<16x32xf32, #tpu.memory_space<vmem>>, vector<16x32xf32>
      %14 = vector.shape_cast %13 : vector<16x32xf32> to vector<1x16x32xf32>
      %cst = arith.constant dense<0.000000e+00> : vector<1xf32>
      %15 = vector.multi_reduction <add>, %14, %cst [1, 2] : vector<1x16x32xf32> to vector<1xf32>
      %16 = vector.shape_cast %15 : vector<1xf32> to vector<1x1x1xf32>
      %17 = vector.extract %16[0, 0, 0] : f32 from vector<1x1x1xf32>
      %cst_12 = arith.constant 0.000000e+00 : f32
      %18 = vector.broadcast %cst_12 : f32 to vector<1x8x128xf32>
      %19 = vector.broadcast %17 : f32 to vector<1x8x128xf32>
      %20 = arith.addf %18, %19 : vector<1x8x128xf32>
      %c0_13 = arith.constant 0 : index
      %c0_14 = arith.constant 0 : index
      %c0_15 = arith.constant 0 : index
      %21 = vector.load %arg4[%c0_13, %c0_14, %c0_15] : memref<1x8x128xf32, #tpu.memory_space<vmem>>, vector<1x8x128xf32>
      tpu.vector_store %arg4[%c0_13, %c0_14, %c0_15], %20 {strides = array<i32>} : memref<1x8x128xf32, #tpu.memory_space<vmem>>, vector<1x8x128xf32>,
    } else {
    }
    return
  }
  func.func @transform_0(%arg0: i32, %arg1: i32) -> (i32, i32) {
    %c1_i32 = arith.constant 1 : i32
    %0 = arith.muli %arg0, %c1_i32 : i32
    %1 = arith.addi %0, %arg1 : i32
    %c0_i32 = arith.constant 0 : i32
    %2 = arith.minsi %1, %c0_i32 : i32
    %c0_i32_0 = arith.constant 0 : i32
    %c0_i32_1 = arith.constant 0 : i32
    return %2, %c0_i32_0 : i32, i32
  }
  func.func @transform_1(%arg0: i32, %arg1: i32) -> (i32, i32) {
    %c1_i32 = arith.constant 1 : i32
    %0 = arith.muli %arg0, %c1_i32 : i32
    %1 = arith.addi %0, %arg1 : i32
    %c0_i32 = arith.constant 0 : i32
    %2 = arith.minsi %1, %c0_i32 : i32
    %c0_i32_0 = arith.constant 0 : i32
    %c0_i32_1 = arith.constant 0 : i32
    return %2, %c0_i32_0 : i32, i32
  }
  func.func @transform_2(%arg0: i32, %arg1: i32) -> (i32, i32, i32) {
    %c0_i32 = arith.constant 0 : i32
    %c0_i32_0 = arith.constant 0 : i32
    %c0_i32_1 = arith.constant 0 : i32
    return %arg0, %c0_i32, %c0_i32_0 : i32, i32, i32
  }
}

</mosaic_0001>

<llo_original>
// kernel: tpu_custom_call.1
$region0: #{tpu_custom_call.1}
  #allocation0 [shape = 'u32[]', space=smem, size = 0x4, offset = 0x4, fixed_abs, tag = 'smem constant byte address 0x4 - core index']
  #allocation1 [shape = 'u32[72,128]{1,0:T(1,128)}', space=vmem, size = 0x9000, scoped, tag = 'internal scratch']
  #allocation2 [shape = 'f32[16,32]{1,0:T(8,128)}', space=vmem, size = 0x2000, scoped, tag = 'scratch operand']
  %s0 = inlined_call_operand.hbm [shape: f32[16,32], index: 0, kind: input, shape index: {}]
  %s1 = inlined_call_operand.hbm [shape: f32[16,32], index: 1, kind: input, shape index: {}]
  %s2 = inlined_call_operand.hbm [shape: f32[1,8,128], index: 2, kind: output, shape index: {}]
  %s3 = sld [smem:[#allocation0]]
  $region34: #{tpu_custom_call.1} parent=0
    _
  %s5 = ssub.s32 1, %s3
  %s6 = scalar_select 0, %s5, %s3
  $region1: #{tpu_custom_call.1} parent=0
    #allocation3 [shape = 'u8[8192]{0}', space=vmem, size = 0x2000, scoped, tag = 'input window, operand 0, single buffered']
    #allocation4 [shape = 's32[1]{0}', space=sflag, size = 0x4, scoped, tag = 'scoped memory for tpu_custom_call.1']
    #allocation5 [shape = 's32[1]{0}', space=sflag, size = 0x4, scoped, tag = 'scoped memory for tpu_custom_call.1']
    #allocation6 [shape = 'u8[8192]{0}', space=vmem, size = 0x2000, scoped, tag = 'input window, operand 1, single buffered']
    #allocation7 [shape = 's32[1]{0}', space=sflag, size = 0x4, scoped, tag = 'scoped memory for tpu_custom_call.1']
    #allocation8 [shape = 'u8[4096]{0}', space=vmem, size = 0x1000, scoped, tag = 'output window, operand 0, single buffered']
    %7 = vsyncpa [#allocation4], 0
    %8 = vsyncpa [#allocation7], 0
    %9 = vsyncpa [#allocation5], 0
    // Predicated region
    $region2: #{tpu_custom_call.1} parent=1 // pred_check
      _
    $region3: #{tpu_custom_call.1} parent=1 // pred_check_branch
      %11 = sbr.rel (0) target = $region5
    $region4: #{tpu_custom_call.1} parent=1 // pred_region
      %s12 = sadd.s32 0, 0
      %p13 = scmp.lt.s32.totalorder %s12, 0
      %s14 = scalar_select %p13, %s12, 0
      %s15 = smul.u32 2, %s14
      %17 = vsyncadd [#allocation4], 0
      %s18 = smul.addr %s15, 8
      %s19 = scalar_lea.hbm %s0, %s18
      %s20 = sshll.u32 %s19, 4
      %s21 = int_to_ptr.hbm [resolvable:$true] %s20
      %s22 = sshll.u32 [#allocation3], 4
      %s23 = int_to_ptr.vmem [resolvable:$true] %s22
      %28 = dma.hbm_to_vmem [thread:$0]  %s21, 256, %s23, [#allocation4], 128, 128, 8
    $region5: #{tpu_custom_call.1} parent=1 // pred_fallthru
      _
    // Predicated region
    $region6: #{tpu_custom_call.1} parent=1 // pred_check
      _
    $region7: #{tpu_custom_call.1} parent=1 // pred_check_branch
      %30 = sbr.rel (0) target = $region9
    $region8: #{tpu_custom_call.1} parent=1 // pred_region
      %s31 = sadd.s32 0, 0
      %p32 = scmp.lt.s32.totalorder %s31, 0
      %s33 = scalar_select %p32, %s31, 0
      %s34 = smul.u32 2, %s33
      %36 = vsyncadd [#allocation7], 0
      %s37 = smul.addr %s34, 8
      %s38 = scalar_lea.hbm %s1, %s37
      %s39 = sshll.u32 %s38, 4
      %s40 = int_to_ptr.hbm [resolvable:$true] %s39
      %s41 = sshll.u32 [#allocation6], 4
      %s42 = int_to_ptr.vmem [resolvable:$true] %s41
      %47 = dma.hbm_to_vmem [thread:$0]  %s40, 256, %s42, [#allocation7], 128, 128, 8
    $region9: #{tpu_custom_call.1} parent=1 // pred_fallthru
      _
    // Predicated region
    $region10: #{tpu_custom_call.1} parent=1 // pred_check
      _
    $region11: #{tpu_custom_call.1} parent=1 // pred_check_branch
      %49 = sbr.rel (0) target = $region13
    $region12: #{tpu_custom_call.1} parent=1 // pred_region
      %51 = dma.done [#allocation4], 256
    $region13: #{tpu_custom_call.1} parent=1 // pred_fallthru
      _
    // Predicated region
    $region14: #{tpu_custom_call.1} parent=1 // pred_check
      _
    $region15: #{tpu_custom_call.1} parent=1 // pred_check_branch
      %53 = sbr.rel (0) target = $region17
    $region16: #{tpu_custom_call.1} parent=1 // pred_region
      %55 = dma.done [#allocation7], 256
    $region17: #{tpu_custom_call.1} parent=1 // pred_fallthru
      _
    %s56 = sadd.s32 0, 0
    %p57 = scmp.lt.s32.totalorder %s56, 0
    %s58 = scalar_select %p57, %s56, 0
    %s59 = smul.u32 2, %s58
    %s60 = sadd.s32 0, 0
    %p61 = scmp.lt.s32.totalorder %s60, 0
    %s62 = scalar_select %p61, %s60, 0
    %s63 = smul.u32 2, %s62
    %v64 = vld [vmem:[#allocation3] sm:$0xff]
    %v65 = vld [vmem:[#allocation3 + $0x8] sm:$0xff]
    %v66 = vld [vmem:[#allocation6] sm:$0xff]
    %v67 = vld [vmem:[#allocation6 + $0x8] sm:$0xff]
    %v68 = vsub.f32 %v64, %v66
    %v69 = vsub.f32 %v65, %v67
    %v70 = vmul.f32 %v68, %v68
    %v71 = vmul.f32 %v69, %v69
    %p72 = scmp.eq.s32.totalorder 0, 0
    // Predicated region
    $region18: #{tpu_custom_call.1} parent=1 // pred_check
      %p73 = pneg %p72
    $region19: #{tpu_custom_call.1} parent=1 // pred_check_branch
      %75 = sbr.rel (%p73) target = $region21
    $region20: #{tpu_custom_call.1} parent=1 // pred_region
      %vm76 = vcmask 261120
      %77 = vst.msk [vmem:[#allocation2] sm:$0xff] %vm76, 0.0
      %78 = vst.msk [vmem:[#allocation2 + $0x8] sm:$0xff] %vm76, 0.0
    $region21: #{tpu_custom_call.1} parent=1 // pred_fallthru
      _
    %v79 = vld [vmem:[#allocation2] sm:$0xff]
    %v80 = vld [vmem:[#allocation2 + $0x8] sm:$0xff]
    %v81 = vadd.f32 %v79, %v70
    %v82 = vadd.f32 %v80, %v71
    %vm83 = vcmask 261120
    %84 = vst.msk [vmem:[#allocation2] sm:$0xff] %vm83, %v81
    %85 = vst.msk [vmem:[#allocation2 + $0x8] sm:$0xff] %vm83, %v82
    // Predicated region
    $region22: #{tpu_custom_call.1} parent=1 // pred_check
      %p86 = pneg %p72
    $region23: #{tpu_custom_call.1} parent=1 // pred_check_branch
      %88 = sbr.rel (%p86) target = $region25
    $region24: #{tpu_custom_call.1} parent=1 // pred_region
      %v89 = vld [vmem:[#allocation2] sm:$0xff]
      %v90 = vld [vmem:[#allocation2 + $0x8] sm:$0xff]
      %v91 = vsel %vm83, %v89, 0.0
      %v92 = vsel %vm83, %v90, 0.0
      %v93 = vadd.f32 %v91, %v92
      %94 = vadd.xlane.f32.xlu0 %v93
      %v95 = vpop.xlane.xlu0 %94
      %v96 = vrot.slane %v95, 4
      %v97 = vadd.f32 %v95, %v96
      %v98 = vrot.slane %v97, 2
      %v99 = vadd.f32 %v97, %v98
      %v100 = vrot.slane %v99, 1
      %v101 = vadd.f32 %v99, %v100
      %s102 = vtos %v101
      %v103 = vstv %s102
      %v104 = vadd.f32 %v103, 0.0
      %105 = vst [vmem:[#allocation8] sm:$0xff] %v104
    $region25: #{tpu_custom_call.1} parent=1 // pred_fallthru
      _
    // Predicated region
    $region26: #{tpu_custom_call.1} parent=1 // pred_check
      _
    $region27: #{tpu_custom_call.1} parent=1 // pred_check_branch
      %107 = sbr.rel (0) target = $region29
    $region28: #{tpu_custom_call.1} parent=1 // pred_region
      %109 = vsyncadd [#allocation5], 0
      %s111 = sshll.u32 [#allocation8], 4
      %s112 = int_to_ptr.vmem [resolvable:$true] %s111
      %s113 = sshll.u32 %s2, 4
      %s114 = int_to_ptr.hbm [resolvable:$true] %s113
      %116 = dma.vmem_to_hbm [thread:$0]  %s112, 128, %s114, [#allocation5]
    $region29: #{tpu_custom_call.1} parent=1 // pred_fallthru
      _
    // Predicated region
    $region30: #{tpu_custom_call.1} parent=1 // pred_check
      _
    $region31: #{tpu_custom_call.1} parent=1 // pred_check_branch
      %118 = sbr.rel (0) target = $region33
    $region32: #{tpu_custom_call.1} parent=1 // pred_region
      %120 = dma.done [#allocation5], 128
    $region33: #{tpu_custom_call.1} parent=1 // pred_fallthru
      _
    %121 = vsyncpa [#allocation4], 1
    %122 = vsyncpa [#allocation7], 1
    %123 = vsyncpa [#allocation5], 1

</llo_original>
